<compile_context>
chip_gen: v6e
topology: v6e:2x2x1
jax: 0.10.0
libtpu: 0.0.40
codegen_flags: <defaults>
</compile_context>

<pallas_src>
import math
import functools

import jax
import jax.numpy as jnp
from jax.experimental import pallas as pl
from jax.experimental.pallas import tpu as pltpu


# ------------------------------- Pallas kernel --------------------------------

def _t_hamiltonian_kernel(tdz_ref, tdx_ref, bdz_ref, bdx_ref, x_ref,
                          xo_ref, zo_ref):
    x = x_ref[...]                                            # (D*F, tile_n)

    # z = -h * (mprod(W^T, x, M) + bias)   (-h folded into T_dz'/b_dz')
    z = jnp.dot(tdz_ref[...], x, preferred_element_type=jnp.float32)
    z = z + bdz_ref[...]                                      # (D*W, tile_n) f32
    zo_ref[...] = z.astype(zo_ref.dtype)

    # x_out = x + h * (mprod(W, z, M) + bias)   (+h folded into T_dx'/b_dx')
    dx = jnp.dot(tdx_ref[...], z.astype(tdx_ref.dtype),
                 preferred_element_type=jnp.float32)
    dx = dx + bdx_ref[...]                                    # (D*F, tile_n) f32
    xo_ref[...] = (x.astype(jnp.float32) + dx).astype(xo_ref.dtype)
    # TODO(synk): a non-None activation would be applied elementwise to dz/dx here;
    # in that case the -h/+h scaling could no longer be folded into the operators.


# ----------------------------- device-aware helpers ----------------------------

def _vmem_capacity_bytes():
    try:
        return int(pltpu.get_tpu_info().vmem_capacity_bytes)
    except Exception:
        return 64 * 2**20          # conservative (v7x-sized) fallback


def _tensorcores_per_chip():
    try:
        dev = jax.local_devices()[0]
        n = getattr(dev, "num_cores", None)
        if n:
            return int(n)
        kind = str(getattr(dev, "device_kind", "")).lower()
        if "v7" in kind or "7x" in kind:
            return 2
    except Exception:
        pass
    return 1


def _pick_tile_n(n, df, dw, stream_itemsize, op_itemsize):
    """Largest sample-tile (multiple of 128 dividing n) that fits the VMEM budget."""
    vmem_cap = _vmem_capacity_bytes()
    # Operators + lane-padded f32 biases; still double-buffer-allocated by the
    # pipeliner even though their block index is constant.
    op_bytes = 2 * (2 * df * dw * op_itemsize + (df + dw) * 128 * 4)
    # Per-lane streaming bytes: double-buffered x-in / x-out / z-out tiles plus
    # the f32 intermediates (z, dx) held between the two matmuls.
    per_lane = 2 * (2 * df + dw) * stream_itemsize + (df + dw) * 4
    budget = int(0.6 * vmem_cap) - op_bytes
    cap = 128
    if budget > 128 * per_lane:
        cap = (budget // per_lane) // 128 * 128
    cands = [t for t in range(128, min(n, cap) + 1, 128) if n % t == 0]
    if not cands:
        return n                       # tiny / awkward n: single full-width block
    best = max(cands)                  # single TC: biggest tile that fits VMEM
    ncores = _tensorcores_per_chip()
    if ncores >= 2:
        # Multi-TensorCore chip (v7x): prefer a grid that splits evenly across
        # cores, as long as tiles stay reasonably wide.
        even = [t for t in cands if (n // t) % ncores == 0 and t >= 512]
        if even:
            best = max(even)
        elif n // best < ncores:
            multi = [t for t in cands if n // t >= ncores]
            if multi:
                best = max(multi)
    return best


# ---------------------- operator folding (grid-invariant) ----------------------

def fold_operators(weight, bias, M, h, *, compute_dtype=jnp.bfloat16):
    """Fold M, M^-1, W, bias and the step size h into (T_dz', T_dx', b_dz', b_dx')."""
    F, Wd, D = weight.shape
    DF, DW = D * F, D * Wd
    hp = jax.lax.Precision.HIGHEST      # tiny one-time precompute, keep exact
    Mf = M.astype(jnp.float32)
    Minv = jnp.linalg.inv(Mf)           # real inverse (no orthonormality assumption)
    wf = weight.astype(jnp.float32)

    W_hat = jnp.einsum('kj,fwj->kfw', Mf, wf, precision=hp)             # (D, F, W)
    G = jnp.einsum('lk,kj,kfw->ljfw', Minv, Mf, W_hat, precision=hp)    # (D, D, F, W)
    T_dz = jnp.transpose(G, (0, 3, 1, 2)).reshape(DW, DF)               # (DW, DF)
    T_dx = jnp.transpose(G, (0, 2, 1, 3)).reshape(DF, DW)               # (DF, DW)

    if bias is None:
        b_vec = jnp.zeros((D,), jnp.float32)
    else:
        b_vec = jnp.reshape(bias, (D,)).astype(jnp.float32)
    b_dz = jnp.broadcast_to(b_vec[:, None], (D, Wd)).reshape(DW, 1)
    b_dx = jnp.broadcast_to(b_vec[:, None], (D, F)).reshape(DF, 1)

    h = jnp.float32(h)
    # TODO(synk): for large D the dense fold inflates FLOPs/VMEM by ~D vs a
    # block-diagonal hat-space (facewise) formulation; revisit if D grows past ~8.
    return ((-h * T_dz).astype(compute_dtype),
            (h * T_dx).astype(compute_dtype),
            (-h * b_dz),
            (h * b_dx))


# ------------------------ flat / facewise performance API ----------------------

def t_hamiltonian_layer_flat(x_flat, T_dz, T_dx, b_dz, b_dx, *, tile_n=None):
    """Flat forward: x_flat (D*F, N) -> (x_out (D*F, N), z (D*W, N)).

    Row index is (tube j, matrix-row); the sample axis N sits on the 128-lane
    dimension.  Chain this function directly when stacking layers to avoid any
    relayout HBM passes.  x_flat is aliased with the x output (treat as donated).
    """
    DF, N = x_flat.shape
    DW = T_dz.shape[0]
    assert T_dz.shape == (DW, DF) and T_dx.shape == (DF, DW)

    stream_it = jnp.dtype(x_flat.dtype).itemsize
    op_it = jnp.dtype(T_dz.dtype).itemsize
    if tile_n is None:
        tile_n = _pick_tile_n(N, DF, DW, stream_it, op_it)
    assert N % tile_n == 0, "sample axis must be divisible by tile_n"

    # Scoped-VMEM limit from the per-step estimate (double-buffered streams,
    # double-buffered operators, lane-padded biases, f32 intermediates).
    est = (2 * (2 * DF + DW) * tile_n * stream_it
           + 2 * 2 * DF * DW * op_it
           + 2 * (DF + DW) * 128 * 4
           + (DF + DW) * tile_n * 4)
    vmem_cap = _vmem_capacity_bytes()
    vmem_limit = int(min(0.85 * vmem_cap, max(1.5 * est, 32 * 2**20)))

    # NOTE: T_dz/T_dx/biases have a constant block index so they are not
    # re-DMA'd per step; pipeline_mode=pl.Buffered(1) could also halve their
    # VMEM allocation on v7x, but default double-buffering is kept for safety.
    xo, zo = pl.pallas_call(
        _t_hamiltonian_kernel,
        out_shape=(jax.ShapeDtypeStruct((DF, N), x_flat.dtype),
                   jax.ShapeDtypeStruct((DW, N), x_flat.dtype)),
        grid_spec=pltpu.PrefetchScalarGridSpec(
            num_scalar_prefetch=0,
            grid=(N // tile_n,),
            in_specs=[
                pl.BlockSpec((DW, DF), lambda i: (0, 0)),        # T_dz' (grid-invariant)
                pl.BlockSpec((DF, DW), lambda i: (0, 0)),        # T_dx' (grid-invariant)
                pl.BlockSpec((DW, 1), lambda i: (0, 0)),         # b_dz'
                pl.BlockSpec((DF, 1), lambda i: (0, 0)),         # b_dx'
                pl.BlockSpec((DF, tile_n), lambda i: (0, i)),    # x tile
            ],
            out_specs=[
                pl.BlockSpec((DF, tile_n), lambda i: (0, i)),    # x out tile
                pl.BlockSpec((DW, tile_n), lambda i: (0, i)),    # z out tile
            ],
        ),
        compiler_params=pltpu.CompilerParams(
            dimension_semantics=("parallel",),
            vmem_limit_bytes=vmem_limit),
        input_output_aliases={4: 0},   # reuse x_flat's HBM buffer for the x output
    )(T_dz, T_dx, b_dz, b_dx, x_flat)
    return xo, zo


# ------------------------- PyTorch-layout compat wrapper ------------------------

def t_hamiltonian_layer(x, weight, bias, M, *, h=1.0, tile_n=None,
                        compute_dtype=jnp.bfloat16):
    """Module-layout forward: x (F, N, D) -> (x_out (F, N, D), z (W, N, D)).

    Pays one relayout pass each way ((F,N,D) <-> (D*F,N)); when stacking several
    Hamiltonian layers, fold the operators once per layer and chain
    `t_hamiltonian_layer_flat` instead to avoid the relayout HBM traffic.
    """
    F, N, D = x.shape
    Wd = weight.shape[1]
    T_dz, T_dx, b_dz, b_dx = fold_operators(weight, bias, M, h,
                                            compute_dtype=compute_dtype)
    # Facewise flat layout: row = (tube j, matrix-row f), lanes = samples.
    x_flat = jnp.transpose(x, (2, 0, 1)).reshape(D * F, N).astype(compute_dtype)
    xo, zo = t_hamiltonian_layer_flat(x_flat, T_dz, T_dx, b_dz, b_dx,
                                      tile_n=tile_n)
    x_out = jnp.transpose(xo.reshape(D, F, N), (1, 2, 0)).astype(x.dtype)
    z_out = jnp.transpose(zo.reshape(D, Wd, N), (1, 2, 0)).astype(x.dtype)
    return x_out, z_out


# ----------------------------- pure-JAX reference -------------------------------

def _mprod_ref(A, B, M, Minv):
    hp = jax.lax.Precision.HIGHEST
    A_hat = jnp.einsum('kj,lpj->lpk', M, A, precision=hp)
    B_hat = jnp.einsum('kj,pmj->pmk', M, B, precision=hp)
    C_hat = jnp.einsum('lpk,pmk->lmk', A_hat, B_hat, precision=hp)
    return jnp.einsum('kj,lmj->lmk', Minv, C_hat, precision=hp)


def forward_ref(x, W, b, M, h):
    Minv = jnp.linalg.inv(M.astype(jnp.float32)).astype(M.dtype)
    Wt = jnp.transpose(W, (1, 0, 2))
    dz = _mprod_ref(Wt, x, M, Minv) + b
    z = -h * dz
    dx = _mprod_ref(W, z, M, Minv) + b
    return x + h * dx, z


def _dct_matrix(n, dtype=jnp.float32):
    """Orthonormal DCT-II matrix (a standard choice of M in the M-product)."""
    j = jnp.arange(n, dtype=dtype)
    k = jnp.arange(n, dtype=dtype)[:, None]
    M = jnp.cos(jnp.pi * (j + 0.5) * k / n) * jnp.sqrt(2.0 / n)
    M = M.at[0].multiply(1.0 / jnp.sqrt(2.0))
    return M.astype(dtype)


if __name__ == "__main__":
    in_features, width, dim3 = 8, 16, 4
    n_samples = 256          # sample axis, tiled along the 128-lane dimension
    h = 0.5
    dtype = jnp.float32

    key = jax.random.PRNGKey(0)
    kw, kb, kx = jax.random.split(key, 3)

    # kaiming_uniform_(a=sqrt(5)) on a 3-D tensor -> bound = 1/sqrt(fan_in),
    # fan_in = size(1) * prod(size[2:]) = width * dim3 ; bias uses the same bound.
    fan_in = width * dim3
    bound = 1.0 / math.sqrt(fan_in)
    weight = jax.random.uniform(kw, (in_features, width, dim3), dtype,
                                minval=-bound, maxval=bound)
    bias = jax.random.uniform(kb, (1, 1, dim3), dtype, minval=-bound, maxval=bound)
    x = jax.random.normal(kx, (in_features, n_samples, dim3), dtype)

    M = _dct_matrix(dim3, dtype)   # explicit orthonormal M for the M-product

    # ----- single layer, PyTorch-layout API (matches the nn.Module forward) -----
    fwd = jax.jit(functools.partial(t_hamiltonian_layer, h=h))
    x_out, z_out = fwd(x, weight, bias, M)
    jax.block_until_ready((x_out, z_out))

    x_ref, z_ref = forward_ref(x, weight, bias, M, h)
    assert x_out.shape == (in_features, n_samples, dim3)
    assert z_out.shape == (width, n_samples, dim3)
    # Tolerances cover bf16 streaming + default (bf16-pass) MXU precision and the
    # changed summation order of the folded operators vs the HIGHEST-prec reference.
    assert jnp.allclose(x_out, x_ref, rtol=2e-2, atol=2e-2)
    assert jnp.allclose(z_out, z_ref, rtol=2e-2, atol=2e-2)

    # ----- two stacked layers, flat layout (no relayout between layers) ---------
    kw2, kb2 = jax.random.split(jax.random.PRNGKey(1), 2)
    weight2 = jax.random.uniform(kw2, (in_features, width, dim3), dtype,
                                 minval=-bound, maxval=bound)
    bias2 = jax.random.uniform(kb2, (1, 1, dim3), dtype, minval=-bound, maxval=bound)

    @jax.jit
    def fwd_stacked(x, w1, b1, w2, b2, M):
        ops1 = fold_operators(w1, b1, M, h)
        ops2 = fold_operators(w2, b2, M, h)
        xf = jnp.transpose(x, (2, 0, 1)).reshape(dim3 * in_features,
                                                 n_samples).astype(jnp.bfloat16)
        xf, _ = t_hamiltonian_layer_flat(xf, *ops1)      # layer 1 (stays flat/bf16)
        xf, zf = t_hamiltonian_layer_flat(xf, *ops2)     # layer 2
        x_o = jnp.transpose(xf.reshape(dim3, in_features, n_samples), (1, 2, 0))
        z_o = jnp.transpose(zf.reshape(dim3, width, n_samples), (1, 2, 0))
        return x_o.astype(x.dtype), z_o.astype(x.dtype)

    x2_out, z2_out = fwd_stacked(x, weight, bias, weight2, bias2, M)
    jax.block_until_ready((x2_out, z2_out))

    x1_ref, _ = forward_ref(x, weight, bias, M, h)
    x2_ref, z2_ref = forward_ref(x1_ref, weight2, bias2, M, h)
    assert jnp.allclose(x2_out, x2_ref, rtol=5e-2, atol=5e-2)
    assert jnp.allclose(z2_out, z2_ref, rtol=5e-2, atol=5e-2)

    print("KERNEL_OK")
</pallas_src>

<mosaic_0001>
module attributes {stable_mosaic.version = 11 : i64} {
  func.func @_t_hamiltonian_kernel(%arg0: i32, %arg1: memref<64x32xbf16, #tpu.memory_space<vmem>>, %arg2: memref<32x64xbf16, #tpu.memory_space<vmem>>, %arg3: memref<64x1xf32, #tpu.memory_space<vmem>>, %arg4: memref<32x1xf32, #tpu.memory_space<vmem>>, %arg5: memref<32x256xbf16, #tpu.memory_space<vmem>>, %arg6: memref<32x256xbf16, #tpu.memory_space<vmem>>, %arg7: memref<64x256xbf16, #tpu.memory_space<vmem>>) attributes {dimension_semantics = [#tpu.dimension_semantics<parallel>], iteration_bounds = array<i64: 1>, scalar_prefetch = 0 : i64, scratch_operands = 0 : i64, tpu.core_type = #tpu.core_type<tc>, window_params = [{pipeline_mode = #tpu.pipeline_mode<synchronous>, transform_indices = @transform_0, window_bounds = array<i64: 64, 32>}, {pipeline_mode = #tpu.pipeline_mode<synchronous>, transform_indices = @transform_1, window_bounds = array<i64: 32, 64>}, {pipeline_mode = #tpu.pipeline_mode<synchronous>, transform_indices = @transform_2, window_bounds = array<i64: 64, 1>}, {pipeline_mode = #tpu.pipeline_mode<synchronous>, transform_indices = @transform_3, window_bounds = array<i64: 32, 1>}, {transform_indices = @transform_4, window_bounds = array<i64: 32, 256>}, {transform_indices = @transform_5, window_bounds = array<i64: 32, 256>}, {transform_indices = @transform_6, window_bounds = array<i64: 64, 256>}]} {
    %c0 = arith.constant 0 : index
    %c0_0 = arith.constant 0 : index
    %0 = vector.load %arg5[%c0, %c0_0] : memref<32x256xbf16, #tpu.memory_space<vmem>>, vector<32x256xbf16>
    %c0_1 = arith.constant 0 : index
    %c0_2 = arith.constant 0 : index
    %1 = vector.load %arg1[%c0_1, %c0_2] : memref<64x32xbf16, #tpu.memory_space<vmem>>, vector<64x32xbf16>
    %cst = arith.constant dense<0.000000e+00> : vector<64x256xf32>
    %2 = tpu.matmul %1, %0, %cst {dimension_numbers = #tpu.dot_dimension_numbers<[1], [0], [0], [1], [0, 0, 1, 1], [], []>} : vector<64x32xbf16>, vector<32x256xbf16>, vector<64x256xf32> -> vector<64x256xf32>
    %c0_3 = arith.constant 0 : index
    %c0_4 = arith.constant 0 : index
    %3 = vector.load %arg3[%c0_3, %c0_4] : memref<64x1xf32, #tpu.memory_space<vmem>>, vector<64x1xf32>
    %4 = vector.broadcast %3 : vector<64x1xf32> to vector<64x256xf32>
    %5 = arith.addf %2, %4 : vector<64x256xf32>
    %6 = arith.truncf %5 : vector<64x256xf32> to vector<64x256xbf16>
    %c0_5 = arith.constant 0 : index
    %c0_6 = arith.constant 0 : index
    %7 = vector.load %arg7[%c0_5, %c0_6] : memref<64x256xbf16, #tpu.memory_space<vmem>>, vector<64x256xbf16>
    tpu.vector_store %arg7[%c0_5, %c0_6], %6 {strides = array<i32>} : memref<64x256xbf16, #tpu.memory_space<vmem>>, vector<64x256xbf16>,
    %c0_7 = arith.constant 0 : index
    %c0_8 = arith.constant 0 : index
    %8 = vector.load %arg2[%c0_7, %c0_8] : memref<32x64xbf16, #tpu.memory_space<vmem>>, vector<32x64xbf16>
    %9 = arith.truncf %5 : vector<64x256xf32> to vector<64x256xbf16>
    %cst_9 = arith.constant dense<0.000000e+00> : vector<32x256xf32>
    %10 = tpu.matmul %8, %9, %cst_9 {dimension_numbers = #tpu.dot_dimension_numbers<[1], [0], [0], [1], [0, 0, 1, 1], [], []>} : vector<32x64xbf16>, vector<64x256xbf16>, vector<32x256xf32> -> vector<32x256xf32>
    %c0_10 = arith.constant 0 : index
    %c0_11 = arith.constant 0 : index
    %11 = vector.load %arg4[%c0_10, %c0_11] : memref<32x1xf32, #tpu.memory_space<vmem>>, vector<32x1xf32>
    %12 = vector.broadcast %11 : vector<32x1xf32> to vector<32x256xf32>
    %13 = arith.addf %10, %12 : vector<32x256xf32>
    %14 = arith.extf %0 : vector<32x256xbf16> to vector<32x256xf32>
    %15 = arith.addf %14, %13 : vector<32x256xf32>
    %16 = arith.truncf %15 : vector<32x256xf32> to vector<32x256xbf16>
    %c0_12 = arith.constant 0 : index
    %c0_13 = arith.constant 0 : index
    %17 = vector.load %arg6[%c0_12, %c0_13] : memref<32x256xbf16, #tpu.memory_space<vmem>>, vector<32x256xbf16>
    tpu.vector_store %arg6[%c0_12, %c0_13], %16 {strides = array<i32>} : memref<32x256xbf16, #tpu.memory_space<vmem>>, vector<32x256xbf16>,
    return
  }
  func.func @transform_0(%arg0: i32) -> (i32, i32) {
    %c0_i32 = arith.constant 0 : i32
    %c0_i32_0 = arith.constant 0 : i32
    %c0_i32_1 = arith.constant 0 : i32
    return %c0_i32, %c0_i32_0 : i32, i32
  }
  func.func @transform_1(%arg0: i32) -> (i32, i32) {
    %c0_i32 = arith.constant 0 : i32
    %c0_i32_0 = arith.constant 0 : i32
    %c0_i32_1 = arith.constant 0 : i32
    return %c0_i32, %c0_i32_0 : i32, i32
  }
  func.func @transform_2(%arg0: i32) -> (i32, i32) {
    %c0_i32 = arith.constant 0 : i32
    %c0_i32_0 = arith.constant 0 : i32
    %c0_i32_1 = arith.constant 0 : i32
    return %c0_i32, %c0_i32_0 : i32, i32
  }
  func.func @transform_3(%arg0: i32) -> (i32, i32) {
    %c0_i32 = arith.constant 0 : i32
    %c0_i32_0 = arith.constant 0 : i32
    %c0_i32_1 = arith.constant 0 : i32
    return %c0_i32, %c0_i32_0 : i32, i32
  }
  func.func @transform_4(%arg0: i32) -> (i32, i32) {
    %c0_i32 = arith.constant 0 : i32
    %c0_i32_0 = arith.constant 0 : i32
    return %c0_i32, %arg0 : i32, i32
  }
  func.func @transform_5(%arg0: i32) -> (i32, i32) {
    %c0_i32 = arith.constant 0 : i32
    %c0_i32_0 = arith.constant 0 : i32
    return %c0_i32, %arg0 : i32, i32
  }
  func.func @transform_6(%arg0: i32) -> (i32, i32) {
    %c0_i32 = arith.constant 0 : i32
    %c0_i32_0 = arith.constant 0 : i32
    return %c0_i32, %arg0 : i32, i32
  }
}

</mosaic_0001>

<llo_original>
// kernel: custom-call.13
$region0: #{custom-call.13}
  %s0 = inlined_call_operand.vmem [shape: f32[1,4,4], index: 0, kind: input, shape index: {}]
  %s1 = inlined_call_operand.vmem [shape: f32[1,4,4], index: 1, kind: output, shape index: {}]
  $region1: #{custom-call.13} parent=0
    #allocation0 [shape = 'u8[4096]{0}', space=vmem, size = 0x1000, scoped, tag = 'operand span for operand 0']
    #allocation1 [shape = 'u8[2048]{0}', space=vmem, size = 0x800, scoped, tag = 'packed  for operand 0']
    #allocation2 [shape = 'u8[4096]{0}', space=vmem, size = 0x1000, scoped, tag = 'operand span for operand 1']
    #allocation3 [shape = 'u8[2048]{0}', space=vmem, size = 0x800, scoped, tag = 'packed  for operand 1']
    #allocation4 [shape = 'f32[4,4]{1,0}', space=vmem, size = 0x1000, scoped, tag = 'rescaled input a']
    // Predicated region
    $region2: #{custom-call.13} parent=1 // pred_check
      _
    $region3: #{custom-call.13} parent=1 // pred_check_branch
      %3 = sbr.rel (0) target = $region5
    $region4: #{custom-call.13} parent=1 // pred_region
      // Predicated region
      $region6: #{custom-call.13} parent=4 // pred_check
        _
      $region7: #{custom-call.13} parent=4 // pred_check_branch
        %5 = sbr.rel target = $region9
      $region8: #{custom-call.13} parent=4 // pred_region
        // Predicated region
        $region21: #{custom-call.13} parent=8 // pred_check
          _
        $region22: #{custom-call.13} parent=8 // pred_check_branch
          %21 = sbr.rel (0) target = $region24
        $region23: #{custom-call.13} parent=8 // pred_region
          %s23 = ssub.s32 16, 1
          loop: start=0, step=1, limit=1
          $region25: #{custom-call.13} parent=23 // loop_pre_header
            _
          $region26: #{custom-call.13} parent=23 // loop_header
            %s25 = sphi 0, %s29
            %p26 = scmp.ge.s32.totalorder %s25, 1
            %s30 = sphi %s0, %s0
            %s31 = sphi [#allocation1], [#allocation1]
          $region27: #{custom-call.13} parent=23 // loop_header_branch
            %28 = sbr.rel (%p26) target = $region31
          $region28: #{custom-call.13} parent=23 // loop_body
            %v32 = vld [vmem:[%s30] sm:%s23]
            %33 = vst [vmem:[%s31] sm:%s23] %v32
          $region29: #{custom-call.13} parent=23 // loop_footer
            %s29 = sadd.s32 1, %s25
          $region30: #{custom-call.13} parent=23 // loop_footer_branch
            %24 = sbr.rel target = $region26
          $region31: #{custom-call.13} parent=23 // loop_exit
            _
        $region24: #{custom-call.13} parent=8 // pred_fallthru
          _
      $region9: #{custom-call.13} parent=4 // pred_fallthru
        _
      // Predicated region
      $region10: #{custom-call.13} parent=4 // pred_check
        _
      $region11: #{custom-call.13} parent=4 // pred_check_branch
        %7 = sbr.rel (0) target = $region13
      $region12: #{custom-call.13} parent=4 // pred_region
        %s9 = ssub.s32 16, 1
        loop: start=0, step=1, limit=1
        $region14: #{custom-call.13} parent=12 // loop_pre_header
          _
        $region15: #{custom-call.13} parent=12 // loop_header
          %s11 = sphi 0, %s15
          %p12 = scmp.ge.s32.totalorder %s11, 1
          %s16 = sphi %s0, %s0
          %s17 = sphi [#allocation1], [#allocation1]
        $region16: #{custom-call.13} parent=12 // loop_header_branch
          %14 = sbr.rel (%p12) target = $region20
        $region17: #{custom-call.13} parent=12 // loop_body
          %v18 = vld [vmem:[%s16] sm:%s9]
          %19 = vst [vmem:[%s17] sm:%s9] %v18
        $region18: #{custom-call.13} parent=12 // loop_footer
          %s15 = sadd.s32 1, %s11
        $region19: #{custom-call.13} parent=12 // loop_footer_branch
          %10 = sbr.rel target = $region15
        $region20: #{custom-call.13} parent=12 // loop_exit
          _
      $region13: #{custom-call.13} parent=4 // pred_fallthru
        _
    $region5: #{custom-call.13} parent=1 // pred_fallthru
      _
    %34 = vnop
    %s36 = sshll.u32 1, 4
    %s37 = ssub.s32 %s36, 1
    %v38 = vld [vmem:[#allocation1] sm:%s37]
    %39 = vst [vmem:[#allocation0] sm:%s37] %v38
    %v40 = vlaneseq
    %v41 = vand.u32 %v40, 127
    %vm42 = vcmp.lt.s32.totalorder %v41, 4
    %v43 = vlaneseq
    %v44 = vshrl.u32 %v43, 7
    %vm46 = vcmp.eq.s32.totalorder %v44, %v41
    %v47 = vld [vmem:[#allocation0] sm:$0xff]
    %v48 = vsel %vm46, %v47, 0.0
    %49 = vadd.xlane.f32.xlu0 %v48
    %v50 = vpop.xlane.xlu0 %49
    %vm51 = vcmp.ge.s32.totalorder %v44, %v41
    %vm52 = vmand %vm51, %vm42
    %v53 = vsel %vm52, %v47, 0.0
    %v54 = vrcp.pop %v50
    %v55 = vmul.f32 %v53, %v54
    %56 = vst [vmem:[#allocation4] sm:$0xff] %v55
    %v57 = vlaneseq
    %v58 = vand.u32 %v57, 127
    %v59 = vlaneseq
    %v60 = vshrl.u32 %v59, 7
    %vm62 = vcmp.eq.s32.totalorder %v58, %v60
    %v63 = vlaneseq
    %v64 = vand.u32 %v63, 127
    %vm65 = vcmp.eq.s32.totalorder %v64, 0
    %v66 = vsel %vm65, 1.0, -1.0
    %v67 = vsel %vm62, %v66, 0.0
    %s68 = scalar_lea.vmem [#allocation4], 1
    %v69 = vld [vmem:[%s68] ss:$0 sm:$0xff]
    %v70 = vxor.u32 %v69, 2147483648
    %v71 = vlaneseq
    %v72 = vand.u32 %v71, 127
    %vm73 = vcmp.eq.s32.totalorder %v72, 1
    %v74 = vmul.f32 %v70, %v67
    %75 = vadd.xlane.f32.xlu0 %v74
    %v76 = vpop.xlane.xlu0 %75
    %v77 = vsel %vm73, %v76, %v67
    %s78 = scalar_lea.vmem [#allocation4], 2
    %v79 = vld [vmem:[%s78] ss:$0 sm:$0xff]
    %v80 = vxor.u32 %v79, 2147483648
    %v81 = vlaneseq
    %v82 = vand.u32 %v81, 127
    %vm83 = vcmp.eq.s32.totalorder %v82, 2
    %v84 = vmul.f32 %v80, %v77
    %85 = vadd.xlane.f32.xlu0 %v84
    %v86 = vpop.xlane.xlu0 %85
    %v87 = vsel %vm83, %v86, %v77
    %s88 = scalar_lea.vmem [#allocation4], 3
    %v89 = vld [vmem:[%s88] ss:$0 sm:$0xff]
    %v90 = vxor.u32 %v89, 2147483648
    %v91 = vlaneseq
    %v92 = vand.u32 %v91, 127
    %vm93 = vcmp.eq.s32.totalorder %v92, 3
    %v94 = vmul.f32 %v90, %v87
    %95 = vadd.xlane.f32.xlu0 %v94
    %v96 = vpop.xlane.xlu0 %95
    %v97 = vsel %vm93, %v96, %v87
    %v98 = vrcp.pop %v50
    %v99 = vmul.f32 %v97, %v98
    %vm100 = vweird.f32 %v50
    %v101 = vsel %vm100, %v97, %v99
    %102 = vst [vmem:[#allocation2] sm:$0xff] %v101
    %s104 = sshll.u32 1, 4
    %s105 = ssub.s32 %s104, 1
    %v107 = vld [vmem:[#allocation2] sm:%s105]
    %s108 = sshll.u32 1, 4
    %s109 = ssub.s32 %s108, 1
    %110 = vst [vmem:[#allocation3] sm:%s109] %v107
    // Predicated region
    $region32: #{custom-call.13} parent=1 // pred_check
      _
    $region33: #{custom-call.13} parent=1 // pred_check_branch
      %112 = sbr.rel (0) target = $region35
    $region34: #{custom-call.13} parent=1 // pred_region
      // Predicated region
      $region36: #{custom-call.13} parent=34 // pred_check
        _
      $region37: #{custom-call.13} parent=34 // pred_check_branch
        %114 = sbr.rel target = $region39
      $region38: #{custom-call.13} parent=34 // pred_region
        // Predicated region
        $region51: #{custom-call.13} parent=38 // pred_check
          _
        $region52: #{custom-call.13} parent=38 // pred_check_branch
          %130 = sbr.rel (0) target = $region54
        $region53: #{custom-call.13} parent=38 // pred_region
          %s132 = ssub.s32 16, 1
          loop: start=0, step=1, limit=1
          $region55: #{custom-call.13} parent=53 // loop_pre_header
            _
          $region56: #{custom-call.13} parent=53 // loop_header
            %s134 = sphi 0, %s138
            %p135 = scmp.ge.s32.totalorder %s134, 1
            %s139 = sphi [#allocation3], [#allocation3]
            %s140 = sphi %s1, %s1
          $region57: #{custom-call.13} parent=53 // loop_header_branch
            %137 = sbr.rel (%p135) target = $region61
          $region58: #{custom-call.13} parent=53 // loop_body
            %v141 = vld [vmem:[%s139] sm:%s132]
            %142 = vst [vmem:[%s140] sm:%s132] %v141
          $region59: #{custom-call.13} parent=53 // loop_footer
            %s138 = sadd.s32 1, %s134
          $region60: #{custom-call.13} parent=53 // loop_footer_branch
            %133 = sbr.rel target = $region56
          $region61: #{custom-call.13} parent=53 // loop_exit
            _
        $region54: #{custom-call.13} parent=38 // pred_fallthru
          _
      $region39: #{custom-call.13} parent=34 // pred_fallthru
        _
      // Predicated region
      $region40: #{custom-call.13} parent=34 // pred_check
        _
      $region41: #{custom-call.13} parent=34 // pred_check_branch
        %116 = sbr.rel (0) target = $region43
      $region42: #{custom-call.13} parent=34 // pred_region
        %s118 = ssub.s32 16, 1
        loop: start=0, step=1, limit=1
        $region44: #{custom-call.13} parent=42 // loop_pre_header
          _
        $region45: #{custom-call.13} parent=42 // loop_header
          %s120 = sphi 0, %s124
          %p121 = scmp.ge.s32.totalorder %s120, 1
          %s125 = sphi [#allocation3], [#allocation3]
          %s126 = sphi %s1, %s1
        $region46: #{custom-call.13} parent=42 // loop_header_branch
          %123 = sbr.rel (%p121) target = $region50
        $region47: #{custom-call.13} parent=42 // loop_body
          %v127 = vld [vmem:[%s125] sm:%s118]
          %128 = vst [vmem:[%s126] sm:%s118] %v127
        $region48: #{custom-call.13} parent=42 // loop_footer
          %s124 = sadd.s32 1, %s120
        $region49: #{custom-call.13} parent=42 // loop_footer_branch
          %119 = sbr.rel target = $region45
        $region50: #{custom-call.13} parent=42 // loop_exit
          _
      $region43: #{custom-call.13} parent=34 // pred_fallthru
        _
    $region35: #{custom-call.13} parent=1 // pred_fallthru
      _
    %143 = vnop

// kernel: custom-call.11
$region0: #{custom-call.11}
  %s0 = inlined_call_operand.vmem [shape: f32[4,4], index: 0, kind: input, shape index: {}]
  %s1 = inlined_call_operand.vmem [shape: f32[4,4], index: 1, kind: output, shape index: {0}]
  %s2 = inlined_call_operand.hbm [shape: s32[4], index: 2, kind: output, shape index: {1}]
  %s3 = inlined_call_operand.vmem [shape: s32[4], index: 3, kind: output, shape index: {2}]
  %4 = xla_tuple %s1, %s2, %s3
  $region1: #{custom-call.11} parent=0
    #allocation0 [shape = 'u8[4096]{0}', space=vmem, size = 0x1000, scoped, tag = 'operand span for operand 0']
    #allocation1 [shape = 'u8[2048]{0}', space=vmem, size = 0x800, scoped, tag = 'packed  for operand 0']
    #allocation2 [shape = 'u8[4096]{0}', space=vmem, size = 0x1000, scoped, tag = 'operand span for operand 1']
    #allocation3 [shape = 'u8[2048]{0}', space=vmem, size = 0x800, scoped, tag = 'packed  for operand 1']
    #allocation4 [shape = 'u8[4096]{0}', space=vmem, size = 0x1000, scoped, tag = 'operand span for operand 2']
    #allocation5 [shape = 'u8[512]{0}', space=vmem, size = 0x400, scoped, tag = 'packed  for operand 2']
    #allocation6 [shape = 's32[1]{0}', space=sflag, size = 0x4, scoped, tag = 'scoped memory for custom-call.11']
    #allocation7 [shape = 'u8[4096]{0}', space=vmem, size = 0x1000, scoped, tag = 'operand span for operand 3']
    #allocation8 [shape = 'u8[512]{0}', space=vmem, size = 0x400, scoped, tag = 'packed  for operand 3']
    #allocation9 [shape = 's32[4,128]{1,0}', space=vmem, size = 0x1000, scoped, tag = 'scratch for permutations']
    %5 = vsyncpa [#allocation6], 0
    %p7 = scmp.gt.s32.totalorder 4, 0
    // Predicated region
    $region2: #{custom-call.11} parent=1 // pred_check
      %p8 = pneg %p7
    $region3: #{custom-call.11} parent=1 // pred_check_branch
      %10 = sbr.rel (%p8) target = $region5
    $region4: #{custom-call.11} parent=1 // pred_region
      %s11 = sshra.s32 4, 3
      %p12 = scmp.gt.s32.totalorder %s11, 0
      // Predicated region
      $region6: #{custom-call.11} parent=4 // pred_check
        %p13 = pneg %p12
      $region7: #{custom-call.11} parent=4 // pred_check_branch
        %15 = sbr.rel (%p13) target = $region9
      $region8: #{custom-call.11} parent=4 // pred_region
        %s16 = ssub.s32 %s11, 1
        %s17 = smul.u32 %s16, 128
        %s18 = sshra.s32 %s17, 4
        %s19 = scalar_lea.vmem %s0, %s18
        %v20 = vld [vmem:[%s0] sm:$0xff]
        // While loop
        $region10: #{custom-call.11} parent=8 // loop_pre_header
          _
        $region11: #{custom-call.11} parent=8 // loop_header
          %s21 = sphi %s0, %s43
          %s22 = sphi [#allocation1], %s44
          %v23 = vphi %v20, %v45
          %s24 = ssub.s32 %s19, 64
          %p25 = scmp.gt.s32.totalorder %s21, %s24
        $region12: #{custom-call.11} parent=8 // loop_header_branch
          %27 = sbr.rel (%p25) target = $region16
        $region13: #{custom-call.11} parent=8 // loop_body
          %28 = vst [vmem:[%s22] sm:$0xff] %v23
          %v29 = vld [vmem:[%s21 + $0x8] sm:$0xff]
          %30 = vst [vmem:[%s22 + $0x8] sm:$0xff] %v29
          %v31 = vld [vmem:[%s21 + $0x10] sm:$0xff]
          %32 = vst [vmem:[%s22 + $0x10] sm:$0xff] %v31
          %v33 = vld [vmem:[%s21 + $0x18] sm:$0xff]
          %34 = vst [vmem:[%s22 + $0x18] sm:$0xff] %v33
          %v35 = vld [vmem:[%s21 + $0x20] sm:$0xff]
          %36 = vst [vmem:[%s22 + $0x20] sm:$0xff] %v35
          %v37 = vld [vmem:[%s21 + $0x28] sm:$0xff]
          %38 = vst [vmem:[%s22 + $0x28] sm:$0xff] %v37
          %v39 = vld [vmem:[%s21 + $0x30] sm:$0xff]
          %40 = vst [vmem:[%s22 + $0x30] sm:$0xff] %v39
          %v41 = vld [vmem:[%s21 + $0x38] sm:$0xff]
          %42 = vst [vmem:[%s22 + $0x38] sm:$0xff] %v41
        $region14: #{custom-call.11} parent=8 // loop_footer
          %s43 = scalar_lea.vmem %s21, 64
          %s44 = scalar_lea.vmem %s22, 64
          %v45 = vld [vmem:[%s21 + $0x40] sm:$0xff]
        $region15: #{custom-call.11} parent=8 // loop_footer_branch
          %46 = sbr.rel target = $region11
        $region16: #{custom-call.11} parent=8 // loop_exit
          _
        // While loop
        $region17: #{custom-call.11} parent=8 // loop_pre_header
          _
        $region18: #{custom-call.11} parent=8 // loop_header
          %s47 = sphi %s21, %s55
          %s48 = sphi %s22, %s56
          %v49 = vphi %v23, %v49
          %p50 = scmp.gt.s32.totalorder %s47, %s19
        $region19: #{custom-call.11} parent=8 // loop_header_branch
          %52 = sbr.rel (%p50) target = $region23
        $region20: #{custom-call.11} parent=8 // loop_body
          %v53 = vld [vmem:[%s47] sm:$0xff]
          %54 = vst [vmem:[%s48] sm:$0xff] %v53
        $region21: #{custom-call.11} parent=8 // loop_footer
          %s55 = scalar_lea.vmem %s47, 8
          %s56 = scalar_lea.vmem %s48, 8
        $region22: #{custom-call.11} parent=8 // loop_footer_branch
          %57 = sbr.rel target = $region18
        $region23: #{custom-call.11} parent=8 // loop_exit
          _
      $region9: #{custom-call.11} parent=4 // pred_fallthru
        _
      %s58 = sand.u32 4, 7
      %s59 = sshll.u32 1, %s58
      %s60 = ssub.s32 %s59, 1
      %s61 = smul.u32 %s11, 128
      %s62 = sshra.s32 %s61, 4
      %s63 = scalar_lea.vmem [#allocation1], %s62
      %s64 = smul.u32 %s11, 128
      %s65 = sshra.s32 %s64, 4
      %s66 = scalar_lea.vmem %s0, %s65
      %v67 = vld [vmem:[%s66] sm:%s60]
      %68 = vst [vmem:[%s63] sm:%s60] %v67
    $region5: #{custom-call.11} parent=1 // pred_fallthru
      _
    %s70 = sshll.u32 1, 4
    %s71 = ssub.s32 %s70, 1
    %v72 = vld [vmem:[#allocation1] sm:%s71]
    %73 = vst [vmem:[#allocation0] sm:%s71] %v72
    %v74 = vld [vmem:[#allocation0] sm:$0xff]
    %75 = vst [vmem:[#allocation2] sm:$0xff] %v74
    %76 = vst [vmem:[#allocation4] sm:$0x1] 0
    %v77 = vlaneseq
    %v78 = vshrl.u32 %v77, 7
    %v79 = vmov %v78
    %81 = vst [vmem:[#allocation9] sm:$0xff] %v79
    loop: start=0, step=1, limit=4
    $region25: #{custom-call.11} parent=1 // loop_pre_header
      _
    $region26: #{custom-call.11} parent=1 // loop_header
      %s83 = sphi 0, %s87
      %p84 = scmp.ge.s32.totalorder %s83, 4
    $region27: #{custom-call.11} parent=1 // loop_header_branch
      %86 = sbr.rel (%p84) target = $region31
    $region28: #{custom-call.11} parent=1 // loop_body
      %v88 = vstv %s83
      %v89 = vlaneseq
      %v90 = vshrl.u32 %v89, 7
      %v91 = vmov %v90
      %v92 = vld [vmem:[#allocation2] sm:$0xff]
      %v93 = vand.u32 2147483647, %v92
      %v95 = vstv %s83
      %vm96 = vcmp.ge.s32.totalorder %v91, %v95
      %vm97 = vcmp.lt.s32.totalorder %v91, 4
      %vm98 = vmand %vm96, %vm97
      %vm99 = vcmp.lt.f32.partialorder -inf, %v93
      %vm100 = vmand %vm98, %vm99
      %v101 = vsel %vm100, %v91, %v88
      %v102 = vsel %vm100, %v93, -inf
      %v103 = vrot.slane %v102, 1
      %v104 = vrot.slane %v101, 1
      %vm105 = vcmp.ge.f32.partialorder %v103, %v102
      %v106 = vsel %vm105, %v103, %v102
      %v107 = vsel %vm105, %v104, %v101
      %v108 = vrot.slane %v103, 1
      %v109 = vrot.slane %v104, 1
      %vm110 = vcmp.ge.f32.partialorder %v108, %v106
      %v111 = vsel %vm110, %v108, %v106
      %v112 = vsel %vm110, %v109, %v107
      %v113 = vrot.slane %v108, 1
      %v114 = vrot.slane %v109, 1
      %vm115 = vcmp.ge.f32.partialorder %v113, %v111
      %v116 = vsel %vm115, %v113, %v111
      %v117 = vsel %vm115, %v114, %v112
      %v118 = vrot.slane %v113, 1
      %v119 = vrot.slane %v114, 1
      %vm120 = vcmp.ge.f32.partialorder %v118, %v116
      %v121 = vsel %vm120, %v118, %v116
      %v122 = vsel %vm120, %v119, %v117
      %v123 = vrot.slane %v118, 1
      %v124 = vrot.slane %v119, 1
      %vm125 = vcmp.ge.f32.partialorder %v123, %v121
      %v126 = vsel %vm125, %v123, %v121
      %v127 = vsel %vm125, %v124, %v122
      %v128 = vrot.slane %v123, 1
      %v129 = vrot.slane %v124, 1
      %vm130 = vcmp.ge.f32.partialorder %v128, %v126
      %v131 = vsel %vm130, %v128, %v126
      %v132 = vsel %vm130, %v129, %v127
      %v133 = vrot.slane %v128, 1
      %v134 = vrot.slane %v129, 1
      %vm135 = vcmp.ge.f32.partialorder %v133, %v131
      %v136 = vsel %vm135, %v133, %v131
      %v137 = vsel %vm135, %v134, %v132
      %s138 = ssub.s32 128, %s83
      %139 = vrot.lane.b32.xlu0 %v137, %s138
      %v140 = vpop.permute.xlu0 %139
      %s141 = vtos %v140
      %v142 = vstv %s83
      %v143 = vlaneseq
      %v144 = vand.u32 %v143, 127
      %vm145 = vcmp.eq.s32.totalorder %v144, %v142
      %v146 = vstv %s141
      %v147 = vld [vmem:[#allocation4] ss:$0 sm:$0xff]
      %v148 = vsel %vm145, %v146, %v147
      %149 = vst [vmem:[#allocation4] sm:$0x1] %v148
      %s150 = scalar_lea.vmem [#allocation2], %s83
      %s151 = scalar_lea.vmem [#allocation2], %s141
      %v152 = vld [vmem:[%s150] ss:$0 sm:$0xff]
      %v153 = vld [vmem:[%s151] ss:$0 sm:$0xff]
      %154 = vst [vmem:[%s151] sm:$0x1] %v152
      %155 = vst [vmem:[%s150] sm:$0x1] %v153
      %s156 = scalar_lea.vmem [#allocation9], %s83
      %s157 = scalar_lea.vmem [#allocation9], %s141
      %v158 = vld [vmem:[%s156] ss:$0 sm:$0xff]
      %v159 = vld [vmem:[%s157] ss:$0 sm:$0xff]
      %160 = vst [vmem:[%s157] sm:$0x1] %v158
      %161 = vst [vmem:[%s156] sm:$0x1] %v159
      %vm162 = vcmp.ne.f32.partialorder %v153, 0.0
      %vm163 = vmand %vm145, %vm162
      %v164 = vsel %vm163, %v153, 1.0
      %v165 = vlaneseq
      %v166 = vand.u32 %v165, 127
      %v167 = vstv %s83
      %vm168 = vcmp.gt.s32.totalorder %v166, %v167
      %v169 = vsel %vm168, %v153, 0.0
      %v170 = vlaneseq
      %v171 = vshrl.u32 %v170, 7
      %v172 = vmov %v171
      %v173 = vld [vmem:[#allocation2] sm:$0xff]
      %v175 = vstv %s83
      %vm176 = vcmp.gt.s32.totalorder %v172, %v175
      %v177 = vsel %vm176, %v164, 1.0
      %v178 = vrcp.pop %v177
      %v179 = vmul.f32 %v173, %v178
      %vm180 = vmand %vm176, %vm145
      %v181 = vsel %vm180, %v179, 0.0
      %182 = vadd.xlane.f32.xlu0 %v181
      %v183 = vpop.xlane.xlu0 %182
      %v184 = vmul.f32 %v183, %v169
      %v185 = vsub.f32 %v179, %v184
      %186 = vst [vmem:[#allocation2] sm:$0xff] %v185
    $region29: #{custom-call.11} parent=1 // loop_footer
      %s87 = sadd.s32 1, %s83
    $region30: #{custom-call.11} parent=1 // loop_footer_branch
      %82 = sbr.rel target = $region26
    $region31: #{custom-call.11} parent=1 // loop_exit
      _
    %v187 = vld [vmem:[#allocation9] sm:$0xff]
    %s188 = scalar_lea.vmem [#allocation9], 8
    %s189 = scalar_lea.vmem [#allocation9], 16
    %s190 = scalar_lea.vmem [#allocation9], 24
    %s191 = scalar_lea.vmem [#allocation9], 32
    %s192 = scalar_lea.vmem [#allocation9], 40
    %s193 = scalar_lea.vmem [#allocation9], 48
    %s194 = scalar_lea.vmem [#allocation9], 56
    %s195 = scalar_lea.vmem [#allocation9], 64
    %s196 = scalar_lea.vmem [#allocation9], 72
    %s197 = scalar_lea.vmem [#allocation9], 80
    %s198 = scalar_lea.vmem [#allocation9], 88
    %s199 = scalar_lea.vmem [#allocation9], 96
    %s200 = scalar_lea.vmem [#allocation9], 104
    %s201 = scalar_lea.vmem [#allocation9], 112
    %s202 = scalar_lea.vmem [#allocation9], 120
    %203 = vxpose.xlu0.b32.start [1/16] %v187, 128
    %204 = vxpose.xlu0.b32.cont [2/16] 0, 128
    %205 = vxpose.xlu0.b32.cont [3/16] 0, 128
    %206 = vxpose.xlu0.b32.cont [4/16] 0, 128
    %207 = vxpose.xlu0.b32.cont [5/16] 0, 128
    %208 = vxpose.xlu0.b32.cont [6/16] 0, 128
    %209 = vxpose.xlu0.b32.cont [7/16] 0, 128
    %210 = vxpose.xlu0.b32.cont [8/16] 0, 128
    %211 = vxpose.xlu0.b32.cont [9/16] 0, 128
    %212 = vxpose.xlu0.b32.cont [10/16] 0, 128
    %213 = vxpose.xlu0.b32.cont [11/16] 0, 128
    %214 = vxpose.xlu0.b32.cont [12/16] 0, 128
    %215 = vxpose.xlu0.b32.cont [13/16] 0, 128
    %216 = vxpose.xlu0.b32.cont [14/16] 0, 128
    %217 = vxpose.xlu0.b32.cont [15/16] 0, 128
    %218 = vxpose.xlu0.b32.end [16/16] 0, 128
    %v219 = vpop.trf.xlu0
    %v220 = vpop.trf.xlu0
    %v221 = vpop.trf.xlu0
    %v222 = vpop.trf.xlu0
    %v223 = vpop.trf.xlu0
    %v224 = vpop.trf.xlu0
    %v225 = vpop.trf.xlu0
    %v226 = vpop.trf.xlu0
    %v227 = vpop.trf.xlu0
    %v228 = vpop.trf.xlu0
    %v229 = vpop.trf.xlu0
    %v230 = vpop.trf.xlu0
    %v231 = vpop.trf.xlu0
    %v232 = vpop.trf.xlu0
    %v233 = vpop.trf.xlu0
    %v234 = vpop.trf.xlu0
    %235 = vst [vmem:[#allocation7] sm:$0x1] %v219
    %s237 = sshll.u32 1, 4
    %s238 = ssub.s32 %s237, 1
    %v240 = vld [vmem:[#allocation2] sm:%s238]
    %s241 = sshll.u32 1, 4
    %s242 = ssub.s32 %s241, 1
    %243 = vst [vmem:[#allocation3] sm:%s242] %v240
    %s245 = sshll.u32 1, 1
    %s246 = ssub.s32 %s245, 1
    %v248 = vld [vmem:[#allocation4] sm:%s246]
    %s249 = sshll.u32 1, 1
    %s250 = ssub.s32 %s249, 1
    %251 = vst [vmem:[#allocation5] sm:%s250] %v248
    %s253 = sshll.u32 1, 1
    %s254 = ssub.s32 %s253, 1
    %v256 = vld [vmem:[#allocation7] sm:%s254]
    %s257 = sshll.u32 1, 1
    %s258 = ssub.s32 %s257, 1
    %259 = vst [vmem:[#allocation8] sm:%s258] %v256
    %p261 = scmp.gt.s32.totalorder 4, 0
    // Predicated region
    $region32: #{custom-call.11} parent=1 // pred_check
      %p262 = pneg %p261
    $region33: #{custom-call.11} parent=1 // pred_check_branch
      %264 = sbr.rel (%p262) target = $region35
    $region34: #{custom-call.11} parent=1 // pred_region
      %s265 = sshra.s32 4, 3
      %p266 = scmp.gt.s32.totalorder %s265, 0
      // Predicated region
      $region36: #{custom-call.11} parent=34 // pred_check
        %p267 = pneg %p266
      $region37: #{custom-call.11} parent=34 // pred_check_branch
        %269 = sbr.rel (%p267) target = $region39
      $region38: #{custom-call.11} parent=34 // pred_region
        %s270 = ssub.s32 %s265, 1
        %s271 = smul.u32 %s270, 128
        %s272 = sshra.s32 %s271, 4
        %s273 = scalar_lea.vmem [#allocation3], %s272
        %v274 = vld [vmem:[#allocation3] sm:$0xff]
        // While loop
        $region40: #{custom-call.11} parent=38 // loop_pre_header
          _
        $region41: #{custom-call.11} parent=38 // loop_header
          %s275 = sphi [#allocation3], %s297
          %s276 = sphi %s1, %s298
          %v277 = vphi %v274, %v299
          %s278 = ssub.s32 %s273, 64
          %p279 = scmp.gt.s32.totalorder %s275, %s278
        $region42: #{custom-call.11} parent=38 // loop_header_branch
          %281 = sbr.rel (%p279) target = $region46
        $region43: #{custom-call.11} parent=38 // loop_body
          %282 = vst [vmem:[%s276] sm:$0xff] %v277
          %v283 = vld [vmem:[%s275 + $0x8] sm:$0xff]
          %284 = vst [vmem:[%s276 + $0x8] sm:$0xff] %v283
          %v285 = vld [vmem:[%s275 + $0x10] sm:$0xff]
          %286 = vst [vmem:[%s276 + $0x10] sm:$0xff] %v285
          %v287 = vld [vmem:[%s275 + $0x18] sm:$0xff]
          %288 = vst [vmem:[%s276 + $0x18] sm:$0xff] %v287
          %v289 = vld [vmem:[%s275 + $0x20] sm:$0xff]
          %290 = vst [vmem:[%s276 + $0x20] sm:$0xff] %v289
          %v291 = vld [vmem:[%s275 + $0x28] sm:$0xff]
          %292 = vst [vmem:[%s276 + $0x28] sm:$0xff] %v291
          %v293 = vld [vmem:[%s275 + $0x30] sm:$0xff]
          %294 = vst [vmem:[%s276 + $0x30] sm:$0xff] %v293
          %v295 = vld [vmem:[%s275 + $0x38] sm:$0xff]
          %296 = vst [vmem:[%s276 + $0x38] sm:$0xff] %v295
        $region44: #{custom-call.11} parent=38 // loop_footer
          %s297 = scalar_lea.vmem %s275, 64
          %s298 = scalar_lea.vmem %s276, 64
          %v299 = vld [vmem:[%s275 + $0x40] sm:$0xff]
        $region45: #{custom-call.11} parent=38 // loop_footer_branch
          %300 = sbr.rel target = $region41
        $region46: #{custom-call.11} parent=38 // loop_exit
          _
        // While loop
        $region47: #{custom-call.11} parent=38 // loop_pre_header
          _
        $region48: #{custom-call.11} parent=38 // loop_header
          %s301 = sphi %s275, %s309
          %s302 = sphi %s276, %s310
          %v303 = vphi %v277, %v303
          %p304 = scmp.gt.s32.totalorder %s301, %s273
        $region49: #{custom-call.11} parent=38 // loop_header_branch
          %306 = sbr.rel (%p304) target = $region53
        $region50: #{custom-call.11} parent=38 // loop_body
          %v307 = vld [vmem:[%s301] sm:$0xff]
          %308 = vst [vmem:[%s302] sm:$0xff] %v307
        $region51: #{custom-call.11} parent=38 // loop_footer
          %s309 = scalar_lea.vmem %s301, 8
          %s310 = scalar_lea.vmem %s302, 8
        $region52: #{custom-call.11} parent=38 // loop_footer_branch
          %311 = sbr.rel target = $region48
        $region53: #{custom-call.11} parent=38 // loop_exit
          _
      $region39: #{custom-call.11} parent=34 // pred_fallthru
        _
      %s312 = sand.u32 4, 7
      %s313 = sshll.u32 1, %s312
      %s314 = ssub.s32 %s313, 1
      %s315 = smul.u32 %s265, 128
      %s316 = sshra.s32 %s315, 4
      %s317 = scalar_lea.vmem %s1, %s316
      %s318 = smul.u32 %s265, 128
      %s319 = sshra.s32 %s318, 4
      %s320 = scalar_lea.vmem [#allocation3], %s319
      %v321 = vld [vmem:[%s320] sm:%s314]
      %322 = vst [vmem:[%s317] sm:%s314] %v321
    $region35: #{custom-call.11} parent=1 // pred_fallthru
      _
    // Predicated region
    $region54: #{custom-call.11} parent=1 // pred_check
      _
    $region55: #{custom-call.11} parent=1 // pred_check_branch
      %324 = sbr.rel (0) target = $region57
    $region56: #{custom-call.11} parent=1 // pred_region
      %s326 = ssub.s32 16, 16
      %327 = vsyncadd [#allocation6], %s326
      %s328 = sshll.u32 [#allocation5], 4
      %s329 = int_to_ptr.vmem [resolvable:$true] %s328
      %331 = dma.vmem_to_hbm [thread:$0]  %s329, 16, %s2, [#allocation6]
    $region57: #{custom-call.11} parent=1 // pred_fallthru
      _
    // Predicated region
    $region58: #{custom-call.11} parent=1 // pred_check
      _
    $region59: #{custom-call.11} parent=1 // pred_check_branch
      %333 = sbr.rel (0) target = $region61
    $region60: #{custom-call.11} parent=1 // pred_region
      %p335 = scmp.gt.s32.totalorder 1, 0
      // Predicated region
      $region62: #{custom-call.11} parent=60 // pred_check
        %p336 = pneg %p335
      $region63: #{custom-call.11} parent=60 // pred_check_branch
        %338 = sbr.rel (%p336) target = $region65
      $region64: #{custom-call.11} parent=60 // pred_region
        %s339 = sshra.s32 1, 3
        %p340 = scmp.gt.s32.totalorder %s339, 0
        // Predicated region
        $region66: #{custom-call.11} parent=64 // pred_check
          %p341 = pneg %p340
        $region67: #{custom-call.11} parent=64 // pred_check_branch
          %343 = sbr.rel (%p341) target = $region69
        $region68: #{custom-call.11} parent=64 // pred_region
          %s344 = ssub.s32 %s339, 1
          %s345 = smul.u32 %s344, 128
          %s346 = sshra.s32 %s345, 4
          %s347 = scalar_lea.vmem [#allocation8], %s346
          %v348 = vld [vmem:[#allocation8] sm:$0xff]
          // While loop
          $region70: #{custom-call.11} parent=68 // loop_pre_header
            _
          $region71: #{custom-call.11} parent=68 // loop_header
            %s349 = sphi [#allocation8], %s371
            %s350 = sphi %s3, %s372
            %v351 = vphi %v348, %v373
            %s352 = ssub.s32 %s347, 64
            %p353 = scmp.gt.s32.totalorder %s349, %s352
          $region72: #{custom-call.11} parent=68 // loop_header_branch
            %355 = sbr.rel (%p353) target = $region76
          $region73: #{custom-call.11} parent=68 // loop_body
            %356 = vst [vmem:[%s350] sm:$0xff] %v351
            %v357 = vld [vmem:[%s349 + $0x8] sm:$0xff]
            %358 = vst [vmem:[%s350 + $0x8] sm:$0xff] %v357
            %v359 = vld [vmem:[%s349 + $0x10] sm:$0xff]
            %360 = vst [vmem:[%s350 + $0x10] sm:$0xff] %v359
            %v361 = vld [vmem:[%s349 + $0x18] sm:$0xff]
            %362 = vst [vmem:[%s350 + $0x18] sm:$0xff] %v361
            %v363 = vld [vmem:[%s349 + $0x20] sm:$0xff]
            %364 = vst [vmem:[%s350 + $0x20] sm:$0xff] %v363
            %v365 = vld [vmem:[%s349 + $0x28] sm:$0xff]
            %366 = vst [vmem:[%s350 + $0x28] sm:$0xff] %v365
            %v367 = vld [vmem:[%s349 + $0x30] sm:$0xff]
            %368 = vst [vmem:[%s350 + $0x30] sm:$0xff] %v367
            %v369 = vld [vmem:[%s349 + $0x38] sm:$0xff]
            %370 = vst [vmem:[%s350 + $0x38] sm:$0xff] %v369
          $region74: #{custom-call.11} parent=68 // loop_footer
            %s371 = scalar_lea.vmem %s349, 64
            %s372 = scalar_lea.vmem %s350, 64
            %v373 = vld [vmem:[%s349 + $0x40] sm:$0xff]
          $region75: #{custom-call.11} parent=68 // loop_footer_branch
            %374 = sbr.rel target = $region71
          $region76: #{custom-call.11} parent=68 // loop_exit
            _
          // While loop
          $region77: #{custom-call.11} parent=68 // loop_pre_header
            _
          $region78: #{custom-call.11} parent=68 // loop_header
            %s375 = sphi %s349, %s383
            %s376 = sphi %s350, %s384
            %v377 = vphi %v351, %v377
            %p378 = scmp.gt.s32.totalorder %s375, %s347
          $region79: #{custom-call.11} parent=68 // loop_header_branch
            %380 = sbr.rel (%p378) target = $region83
          $region80: #{custom-call.11} parent=68 // loop_body
            %v381 = vld [vmem:[%s375] sm:$0xff]
            %382 = vst [vmem:[%s376] sm:$0xff] %v381
          $region81: #{custom-call.11} parent=68 // loop_footer
            %s383 = scalar_lea.vmem %s375, 8
            %s384 = scalar_lea.vmem %s376, 8
          $region82: #{custom-call.11} parent=68 // loop_footer_branch
            %385 = sbr.rel target = $region78
          $region83: #{custom-call.11} parent=68 // loop_exit
            _
        $region69: #{custom-call.11} parent=64 // pred_fallthru
          _
        %s386 = sand.u32 1, 7
        %s387 = sshll.u32 1, %s386
        %s388 = ssub.s32 %s387, 1
        %s389 = smul.u32 %s339, 128
        %s390 = sshra.s32 %s389, 4
        %s391 = scalar_lea.vmem %s3, %s390
        %s392 = smul.u32 %s339, 128
        %s393 = sshra.s32 %s392, 4
        %s394 = scalar_lea.vmem [#allocation8], %s393
        %v395 = vld [vmem:[%s394] sm:%s388]
        %396 = vst [vmem:[%s391] sm:%s388] %v395
      $region65: #{custom-call.11} parent=60 // pred_fallthru
        _
    $region61: #{custom-call.11} parent=1 // pred_fallthru
      _
    // Predicated region
    $region84: #{custom-call.11} parent=1 // pred_check
      _
    $region85: #{custom-call.11} parent=1 // pred_check_branch
      %398 = sbr.rel (0) target = $region87
    $region86: #{custom-call.11} parent=1 // pred_region
      %399 = dma.done [#allocation6], 16
    $region87: #{custom-call.11} parent=1 // pred_fallthru
      _
    // Predicated region
    $region88: #{custom-call.11} parent=1 // pred_check
      _
    $region89: #{custom-call.11} parent=1 // pred_check_branch
      %401 = sbr.rel (0) target = $region91
    $region90: #{custom-call.11} parent=1 // pred_region
      _
    $region91: #{custom-call.11} parent=1 // pred_fallthru
      _
    %402 = vsyncpa [#allocation6], 1

// kernel: custom-call.12
$region0: #{custom-call.12}
  %s0 = inlined_call_operand.vmem [shape: f32[1,4,4], index: 0, kind: input, shape index: {}]
  %s1 = inlined_call_operand.vmem [shape: f32[1,4,4], index: 1, kind: output, shape index: {}]
  $region1: #{custom-call.12} parent=0
    #allocation0 [shape = 'u8[4096]{0}', space=vmem, size = 0x1000, scoped, tag = 'operand span for operand 0']
    #allocation1 [shape = 'u8[2048]{0}', space=vmem, size = 0x800, scoped, tag = 'packed  for operand 0']
    #allocation2 [shape = 'u8[4096]{0}', space=vmem, size = 0x1000, scoped, tag = 'operand span for operand 1']
    #allocation3 [shape = 'u8[2048]{0}', space=vmem, size = 0x800, scoped, tag = 'packed  for operand 1']
    #allocation4 [shape = 'f32[4,4]{1,0}', space=vmem, size = 0x1000, scoped, tag = 'rescaled input a']
    // Predicated region
    $region2: #{custom-call.12} parent=1 // pred_check
      _
    $region3: #{custom-call.12} parent=1 // pred_check_branch
      %3 = sbr.rel (0) target = $region5
    $region4: #{custom-call.12} parent=1 // pred_region
      // Predicated region
      $region6: #{custom-call.12} parent=4 // pred_check
        _
      $region7: #{custom-call.12} parent=4 // pred_check_branch
        %5 = sbr.rel target = $region9
      $region8: #{custom-call.12} parent=4 // pred_region
        // Predicated region
        $region21: #{custom-call.12} parent=8 // pred_check
          _
        $region22: #{custom-call.12} parent=8 // pred_check_branch
          %21 = sbr.rel (0) target = $region24
        $region23: #{custom-call.12} parent=8 // pred_region
          %s23 = ssub.s32 16, 1
          loop: start=0, step=1, limit=1
          $region25: #{custom-call.12} parent=23 // loop_pre_header
            _
          $region26: #{custom-call.12} parent=23 // loop_header
            %s25 = sphi 0, %s29
            %p26 = scmp.ge.s32.totalorder %s25, 1
            %s30 = sphi %s0, %s0
            %s31 = sphi [#allocation1], [#allocation1]
          $region27: #{custom-call.12} parent=23 // loop_header_branch
            %28 = sbr.rel (%p26) target = $region31
          $region28: #{custom-call.12} parent=23 // loop_body
            %v32 = vld [vmem:[%s30] sm:%s23]
            %33 = vst [vmem:[%s31] sm:%s23] %v32
          $region29: #{custom-call.12} parent=23 // loop_footer
            %s29 = sadd.s32 1, %s25
          $region30: #{custom-call.12} parent=23 // loop_footer_branch
            %24 = sbr.rel target = $region26
          $region31: #{custom-call.12} parent=23 // loop_exit
            _
        $region24: #{custom-call.12} parent=8 // pred_fallthru
          _
      $region9: #{custom-call.12} parent=4 // pred_fallthru
        _
      // Predicated region
      $region10: #{custom-call.12} parent=4 // pred_check
        _
      $region11: #{custom-call.12} parent=4 // pred_check_branch
        %7 = sbr.rel (0) target = $region13
      $region12: #{custom-call.12} parent=4 // pred_region
        %s9 = ssub.s32 16, 1
        loop: start=0, step=1, limit=1
        $region14: #{custom-call.12} parent=12 // loop_pre_header
          _
        $region15: #{custom-call.12} parent=12 // loop_header
          %s11 = sphi 0, %s15
          %p12 = scmp.ge.s32.totalorder %s11, 1
          %s16 = sphi %s0, %s0
          %s17 = sphi [#allocation1], [#allocation1]
        $region16: #{custom-call.12} parent=12 // loop_header_branch
          %14 = sbr.rel (%p12) target = $region20
        $region17: #{custom-call.12} parent=12 // loop_body
          %v18 = vld [vmem:[%s16] sm:%s9]
          %19 = vst [vmem:[%s17] sm:%s9] %v18
        $region18: #{custom-call.12} parent=12 // loop_footer
          %s15 = sadd.s32 1, %s11
        $region19: #{custom-call.12} parent=12 // loop_footer_branch
          %10 = sbr.rel target = $region15
        $region20: #{custom-call.12} parent=12 // loop_exit
          _
      $region13: #{custom-call.12} parent=4 // pred_fallthru
        _
    $region5: #{custom-call.12} parent=1 // pred_fallthru
      _
    %34 = vnop
    %s36 = sshll.u32 1, 4
    %s37 = ssub.s32 %s36, 1
    %v38 = vld [vmem:[#allocation1] sm:%s37]
    %39 = vst [vmem:[#allocation0] sm:%s37] %v38
    %v40 = vlaneseq
    %v41 = vand.u32 %v40, 127
    %vm42 = vcmp.lt.s32.totalorder %v41, 4
    %v43 = vlaneseq
    %v44 = vshrl.u32 %v43, 7
    %vm46 = vcmp.eq.s32.totalorder %v44, %v41
    %v47 = vld [vmem:[#allocation0] sm:$0xff]
    %v48 = vsel %vm46, %v47, 0.0
    %49 = vadd.xlane.f32.xlu0 %v48
    %v50 = vpop.xlane.xlu0 %49
    %vm51 = vcmp.le.s32.totalorder %v44, %v41
    %vm52 = vmand %vm51, %vm42
    %v53 = vsel %vm52, %v47, 0.0
    %v54 = vrcp.pop %v50
    %v55 = vmul.f32 %v53, %v54
    %56 = vst [vmem:[#allocation4] sm:$0xff] %v55
    %v57 = vlaneseq
    %v58 = vand.u32 %v57, 127
    %v59 = vlaneseq
    %v60 = vshrl.u32 %v59, 7
    %vm62 = vcmp.eq.s32.totalorder %v58, %v60
    %v63 = vlaneseq
    %v64 = vand.u32 %v63, 127
    %vm65 = vcmp.eq.s32.totalorder %v64, 3
    %v66 = vsel %vm65, 1.0, -1.0
    %v67 = vsel %vm62, %v66, 0.0
    %s68 = scalar_lea.vmem [#allocation4], 2
    %v69 = vld [vmem:[%s68] ss:$0 sm:$0xff]
    %v70 = vxor.u32 %v69, 2147483648
    %v71 = vlaneseq
    %v72 = vand.u32 %v71, 127
    %vm73 = vcmp.eq.s32.totalorder %v72, 2
    %v74 = vmul.f32 %v70, %v67
    %75 = vadd.xlane.f32.xlu0 %v74
    %v76 = vpop.xlane.xlu0 %75
    %v77 = vsel %vm73, %v76, %v67
    %s78 = scalar_lea.vmem [#allocation4], 1
    %v79 = vld [vmem:[%s78] ss:$0 sm:$0xff]
    %v80 = vxor.u32 %v79, 2147483648
    %v81 = vlaneseq
    %v82 = vand.u32 %v81, 127
    %vm83 = vcmp.eq.s32.totalorder %v82, 1
    %v84 = vmul.f32 %v80, %v77
    %85 = vadd.xlane.f32.xlu0 %v84
    %v86 = vpop.xlane.xlu0 %85
    %v87 = vsel %vm83, %v86, %v77
    %v88 = vld [vmem:[#allocation4] ss:$0 sm:$0xff]
    %v89 = vxor.u32 %v88, 2147483648
    %v90 = vlaneseq
    %v91 = vand.u32 %v90, 127
    %vm92 = vcmp.eq.s32.totalorder %v91, 0
    %v93 = vmul.f32 %v89, %v87
    %94 = vadd.xlane.f32.xlu0 %v93
    %v95 = vpop.xlane.xlu0 %94
    %v96 = vsel %vm92, %v95, %v87
    %v97 = vrcp.pop %v50
    %v98 = vmul.f32 %v96, %v97
    %vm99 = vweird.f32 %v50
    %v100 = vsel %vm99, %v96, %v98
    %101 = vst [vmem:[#allocation2] sm:$0xff] %v100
    %s103 = sshll.u32 1, 4
    %s104 = ssub.s32 %s103, 1
    %v106 = vld [vmem:[#allocation2] sm:%s104]
    %s107 = sshll.u32 1, 4
    %s108 = ssub.s32 %s107, 1
    %109 = vst [vmem:[#allocation3] sm:%s108] %v106
    // Predicated region
    $region32: #{custom-call.12} parent=1 // pred_check
      _
    $region33: #{custom-call.12} parent=1 // pred_check_branch
      %111 = sbr.rel (0) target = $region35
    $region34: #{custom-call.12} parent=1 // pred_region
      // Predicated region
      $region36: #{custom-call.12} parent=34 // pred_check
        _
      $region37: #{custom-call.12} parent=34 // pred_check_branch
        %113 = sbr.rel target = $region39
      $region38: #{custom-call.12} parent=34 // pred_region
        // Predicated region
        $region51: #{custom-call.12} parent=38 // pred_check
          _
        $region52: #{custom-call.12} parent=38 // pred_check_branch
          %129 = sbr.rel (0) target = $region54
        $region53: #{custom-call.12} parent=38 // pred_region
          %s131 = ssub.s32 16, 1
          loop: start=0, step=1, limit=1
          $region55: #{custom-call.12} parent=53 // loop_pre_header
            _
          $region56: #{custom-call.12} parent=53 // loop_header
            %s133 = sphi 0, %s137
            %p134 = scmp.ge.s32.totalorder %s133, 1
            %s138 = sphi [#allocation3], [#allocation3]
            %s139 = sphi %s1, %s1
          $region57: #{custom-call.12} parent=53 // loop_header_branch
            %136 = sbr.rel (%p134) target = $region61
          $region58: #{custom-call.12} parent=53 // loop_body
            %v140 = vld [vmem:[%s138] sm:%s131]
            %141 = vst [vmem:[%s139] sm:%s131] %v140
          $region59: #{custom-call.12} parent=53 // loop_footer
            %s137 = sadd.s32 1, %s133
          $region60: #{custom-call.12} parent=53 // loop_footer_branch
            %132 = sbr.rel target = $region56
          $region61: #{custom-call.12} parent=53 // loop_exit
            _
        $region54: #{custom-call.12} parent=38 // pred_fallthru
          _
      $region39: #{custom-call.12} parent=34 // pred_fallthru
        _
      // Predicated region
      $region40: #{custom-call.12} parent=34 // pred_check
        _
      $region41: #{custom-call.12} parent=34 // pred_check_branch
        %115 = sbr.rel (0) target = $region43
      $region42: #{custom-call.12} parent=34 // pred_region
        %s117 = ssub.s32 16, 1
        loop: start=0, step=1, limit=1
        $region44: #{custom-call.12} parent=42 // loop_pre_header
          _
        $region45: #{custom-call.12} parent=42 // loop_header
          %s119 = sphi 0, %s123
          %p120 = scmp.ge.s32.totalorder %s119, 1
          %s124 = sphi [#allocation3], [#allocation3]
          %s125 = sphi %s1, %s1
        $region46: #{custom-call.12} parent=42 // loop_header_branch
          %122 = sbr.rel (%p120) target = $region50
        $region47: #{custom-call.12} parent=42 // loop_body
          %v126 = vld [vmem:[%s124] sm:%s117]
          %127 = vst [vmem:[%s125] sm:%s117] %v126
        $region48: #{custom-call.12} parent=42 // loop_footer
          %s123 = sadd.s32 1, %s119
        $region49: #{custom-call.12} parent=42 // loop_footer_branch
          %118 = sbr.rel target = $region45
        $region50: #{custom-call.12} parent=42 // loop_exit
          _
      $region43: #{custom-call.12} parent=34 // pred_fallthru
        _
    $region35: #{custom-call.12} parent=1 // pred_fallthru
      _
    %142 = vnop

// kernel: t_hamiltonian_layer.1
$region0: #{t_hamiltonian_layer.1}
  #allocation0 [shape = 'u32[]', space=smem, size = 0x4, offset = 0x4, fixed_abs, tag = 'smem constant byte address 0x4 - core index']
  #allocation1 [shape = 'u32[144,128]{1,0:T(1,128)}', space=vmem, size = 0x12000, scoped, tag = 'internal scratch']
  %s0 = inlined_call_operand.vmem [shape: bf16[64,32], index: 0, kind: input, shape index: {}]
  %s1 = inlined_call_operand.vmem [shape: bf16[32,64], index: 1, kind: input, shape index: {}]
  %s2 = inlined_call_operand.vmem [shape: f32[64,1], index: 2, kind: input, shape index: {}]
  %s3 = inlined_call_operand.vmem [shape: f32[32,1], index: 3, kind: input, shape index: {}]
  %s4 = inlined_call_operand.vmem [shape: bf16[32,256], index: 4, kind: input, shape index: {}, may-alias: {4,5}]
  %s5 = inlined_call_operand.vmem [shape: bf16[32,256], index: 5, kind: output, shape index: {0}, may-alias: {4,5}]
  %s6 = inlined_call_operand.vmem [shape: bf16[64,256], index: 6, kind: output, shape index: {1}]
  %7 = xla_tuple %s5, %s6
  %s8 = sld [smem:[#allocation0]]
  $region38: #{t_hamiltonian_layer.1} parent=0
    _
  %s10 = ssub.s32 1, %s8
  %s11 = scalar_select 0, %s10, %s8
  // Predicated region
  $region2: #{t_hamiltonian_layer.1} parent=0 // pred_check
    _
  $region3: #{t_hamiltonian_layer.1} parent=0 // pred_check_branch
    %13 = sbr.rel (0) target = $region5
  $region4: #{t_hamiltonian_layer.1} parent=0 // pred_region
    _
  $region5: #{t_hamiltonian_layer.1} parent=0 // pred_fallthru
    _
  // Predicated region
  $region6: #{t_hamiltonian_layer.1} parent=0 // pred_check
    _
  $region7: #{t_hamiltonian_layer.1} parent=0 // pred_check_branch
    %15 = sbr.rel (0) target = $region9
  $region8: #{t_hamiltonian_layer.1} parent=0 // pred_region
    _
  $region9: #{t_hamiltonian_layer.1} parent=0 // pred_fallthru
    _
  // Predicated region
  $region10: #{t_hamiltonian_layer.1} parent=0 // pred_check
    _
  $region11: #{t_hamiltonian_layer.1} parent=0 // pred_check_branch
    %17 = sbr.rel (0) target = $region13
  $region12: #{t_hamiltonian_layer.1} parent=0 // pred_region
    _
  $region13: #{t_hamiltonian_layer.1} parent=0 // pred_fallthru
    _
  // Predicated region
  $region14: #{t_hamiltonian_layer.1} parent=0 // pred_check
    _
  $region15: #{t_hamiltonian_layer.1} parent=0 // pred_check_branch
    %19 = sbr.rel (0) target = $region17
  $region16: #{t_hamiltonian_layer.1} parent=0 // pred_region
    _
  $region17: #{t_hamiltonian_layer.1} parent=0 // pred_fallthru
    _
  // Predicated region
  $region18: #{t_hamiltonian_layer.1} parent=0 // pred_check
    _
  $region19: #{t_hamiltonian_layer.1} parent=0 // pred_check_branch
    %21 = sbr.rel (0) target = $region21
  $region20: #{t_hamiltonian_layer.1} parent=0 // pred_region
    _
  $region21: #{t_hamiltonian_layer.1} parent=0 // pred_fallthru
    _
  %v23 = vld [vmem:[%s4] sm:$0xff]
  %v24 = vld [vmem:[%s4 + $0x8] sm:$0xff]
  %v25 = vld [vmem:[%s4 + $0x10] sm:$0xff]
  %v26 = vld [vmem:[%s4 + $0x18] sm:$0xff]
  %v27 = vld [vmem:[%s0] sm:$0xf]
  %v28 = vld [vmem:[%s0 + $0x4] sm:$0xf]
  %v29 = vld [vmem:[%s0 + $0x8] sm:$0xf]
  %v30 = vld [vmem:[%s0 + $0xc] sm:$0xf]
  %v31 = vld [vmem:[%s0 + $0x10] sm:$0xf]
  %v32 = vld [vmem:[%s0 + $0x14] sm:$0xf]
  %v33 = vld [vmem:[%s0 + $0x18] sm:$0xf]
  %v34 = vld [vmem:[%s0 + $0x1c] sm:$0xf]
  %v35 = vld [vmem:[%s2] sm:$0xff]
  %v36 = vld [vmem:[%s2 + $0x8] sm:$0xff]
  %v37 = vld [vmem:[%s2 + $0x10] sm:$0xff]
  %v38 = vld [vmem:[%s2 + $0x18] sm:$0xff]
  %v39 = vld [vmem:[%s2 + $0x20] sm:$0xff]
  %v40 = vld [vmem:[%s2 + $0x28] sm:$0xff]
  %v41 = vld [vmem:[%s2 + $0x30] sm:$0xff]
  %v42 = vld [vmem:[%s2 + $0x38] sm:$0xff]
  %44 = vset.pattern.permute.xlu0 0
  %45 = vperm.xlu0 %44, %v35
  %v46 = vpop.permute.xlu0 %45
  %49 = vset.pattern.permute.xlu0 0
  %50 = vperm.xlu0 %49, %v36
  %v51 = vpop.permute.xlu0 %50
  %54 = vset.pattern.permute.xlu0 0
  %55 = vperm.xlu0 %54, %v37
  %v56 = vpop.permute.xlu0 %55
  %59 = vset.pattern.permute.xlu0 0
  %60 = vperm.xlu0 %59, %v38
  %v61 = vpop.permute.xlu0 %60
  %64 = vset.pattern.permute.xlu0 0
  %65 = vperm.xlu0 %64, %v39
  %v66 = vpop.permute.xlu0 %65
  %69 = vset.pattern.permute.xlu0 0
  %70 = vperm.xlu0 %69, %v40
  %v71 = vpop.permute.xlu0 %70
  %74 = vset.pattern.permute.xlu0 0
  %75 = vperm.xlu0 %74, %v41
  %v76 = vpop.permute.xlu0 %75
  %79 = vset.pattern.permute.xlu0 0
  %80 = vperm.xlu0 %79, %v42
  %v81 = vpop.permute.xlu0 %80
  %v91 = vunpack.c.l.b16 %v27
  %v92 = vunpack.c.l.b16 %v28
  %v93 = vunpack.c.l.b16 %v29
  %v94 = vunpack.c.l.b16 %v30
  %v95 = vunpack.c.l.b16 %v31
  %v96 = vunpack.c.l.b16 %v32
  %v97 = vunpack.c.l.b16 %v33
  %v98 = vunpack.c.l.b16 %v34
  %v99 = vpack.c.b16 %v92, %v91
  %v100 = vpack.c.b16 %v94, %v93
  %v101 = vpack.c.b16 %v96, %v95
  %v102 = vpack.c.b16 %v98, %v97
  %v107 = vunpack.c.l.b16 %v23
  %v108 = vunpack.c.h.b16 %v23
  %v109 = vunpack.c.l.b16 %v24
  %v110 = vunpack.c.h.b16 %v24
  %v111 = vunpack.c.l.b16 %v25
  %v112 = vunpack.c.h.b16 %v25
  %v113 = vunpack.c.l.b16 %v26
  %v114 = vunpack.c.h.b16 %v26
  %v115 = vpack.c.b16 %v109, %v107
  %v116 = vpack.c.b16 %v110, %v108
  %v117 = vpack.c.b16 %v113, %v111
  %v118 = vpack.c.b16 %v114, %v112
  %vm123 = vcmask 261120
  %v125 = vsel %vm123, %v99, 0
  %v128 = vsel %vm123, %v100, 0
  %v131 = vsel %vm123, %v101, 0
  %v134 = vsel %vm123, %v102, 0
  %136 = vmatprep.subr.bf16.mxu0 0
  %137 = vmatpush1.bf16.msra.mxu0 0
  %138 = vmatprep.subr.bf16.mxu0 0
  %139 = vmatpush1.bf16.msra.mxu0 0
  %140 = vmatprep.subr.bf16.mxu0 0
  %141 = vmatpush1.bf16.msra.mxu0 0
  %142 = vmatprep.subr.bf16.mxu0 0
  %143 = vmatpush1.bf16.msra.mxu0 0
  %144 = vmatprep.subr.bf16.mxu0 0
  %145 = vmatpush1.bf16.msra.mxu0 0
  %146 = vmatprep.subr.bf16.mxu0 0
  %147 = vmatpush1.bf16.msra.mxu0 0
  %148 = vmatprep.subr.bf16.mxu0 %v118
  %149 = vmatpush1.bf16.msra.mxu0 %v117
  %150 = vmatprep.subr.bf16.mxu0 %v116
  %151 = vmatpush1.bf16.msra.mxu0 %v115
  %152 = vmatprep.subr.bf16.mxu0 0
  %153 = vmatpush2.bf16.msra.mxu0 0
  %154 = vmatprep.subr.bf16.mxu0 0
  %155 = vmatpush2.bf16.msra.mxu0 0
  %156 = vmatprep.subr.bf16.mxu0 0
  %157 = vmatpush2.bf16.msra.mxu0 0
  %158 = vmatprep.subr.bf16.mxu0 0
  %159 = vmatpush2.bf16.msra.mxu0 0
  %160 = vmatprep.subr.bf16.mxu0 0
  %161 = vmatpush2.bf16.msra.mxu0 0
  %162 = vmatprep.subr.bf16.mxu0 0
  %163 = vmatpush2.bf16.msra.mxu0 0
  %164 = vmatprep.subr.bf16.mxu0 0
  %165 = vmatpush2.bf16.msra.mxu0 0
  %166 = vmatprep.subr.bf16.mxu0 0
  %167 = vmatpush2.bf16.msra.mxu0 0
  %168 = vmatprep.mubr.bf16.mxu0 0
  %169 = vmatmul.mubr.bf16.gmra.mxu0 %v125
  %v170 = vpop.f32.mrf.mxu0
  %v171 = vadd.f32 %v46, %v170
  %v172 = vpop.f32.mrf.mxu0
  %v173 = vadd.f32 %v46, %v172
  %v174 = vpop.f32.mrf.mxu0
  %v175 = vadd.f32 %v51, %v174
  %v176 = vpop.f32.mrf.mxu0
  %v177 = vadd.f32 %v51, %v176
  %178 = vmatprep.mubr.bf16.mxu0 0
  %179 = vmatmul.mubr.bf16.gmra.mxu0 %v128
  %v180 = vpop.f32.mrf.mxu0
  %v181 = vadd.f32 %v56, %v180
  %v182 = vpop.f32.mrf.mxu0
  %v183 = vadd.f32 %v56, %v182
  %v184 = vpop.f32.mrf.mxu0
  %v185 = vadd.f32 %v61, %v184
  %v186 = vpop.f32.mrf.mxu0
  %v187 = vadd.f32 %v61, %v186
  %188 = vmatprep.mubr.bf16.mxu0 0
  %189 = vmatmul.mubr.bf16.gmra.mxu0 %v131
  %v190 = vpop.f32.mrf.mxu0
  %v191 = vadd.f32 %v66, %v190
  %v192 = vpop.f32.mrf.mxu0
  %v193 = vadd.f32 %v66, %v192
  %v194 = vpop.f32.mrf.mxu0
  %v195 = vadd.f32 %v71, %v194
  %v196 = vpop.f32.mrf.mxu0
  %v197 = vadd.f32 %v71, %v196
  %198 = vmatprep.mubr.bf16.mxu0 0
  %199 = vmatmul.mubr.bf16.gmra.mxu0 %v134
  %v200 = vpop.f32.mrf.mxu0
  %v201 = vadd.f32 %v76, %v200
  %v202 = vpop.f32.mrf.mxu0
  %v203 = vadd.f32 %v76, %v202
  %v204 = vpop.f32.mrf.mxu0
  %v205 = vadd.f32 %v81, %v204
  %v206 = vpop.f32.mrf.mxu0
  %v207 = vadd.f32 %v81, %v206
  %208 = vdwg.mxu0
  %v209 = vpack.c.bf16 %v175, %v171
  %v210 = vpack.c.bf16 %v177, %v173
  %v211 = vpack.c.bf16 %v185, %v181
  %v212 = vpack.c.bf16 %v187, %v183
  %v213 = vpack.c.bf16 %v195, %v191
  %v214 = vpack.c.bf16 %v197, %v193
  %v215 = vpack.c.bf16 %v205, %v201
  %v216 = vpack.c.bf16 %v207, %v203
  %v225 = vunpack.c.l.b16 %v209
  %v226 = vunpack.c.l.b16 %v210
  %v227 = vunpack.c.h.b16 %v209
  %v228 = vunpack.c.h.b16 %v210
  %v229 = vunpack.c.l.b16 %v211
  %v230 = vunpack.c.l.b16 %v212
  %v231 = vunpack.c.h.b16 %v211
  %v232 = vunpack.c.h.b16 %v212
  %v233 = vunpack.c.l.b16 %v213
  %v234 = vunpack.c.l.b16 %v214
  %v235 = vunpack.c.h.b16 %v213
  %v236 = vunpack.c.h.b16 %v214
  %v237 = vunpack.c.l.b16 %v215
  %v238 = vunpack.c.l.b16 %v216
  %v239 = vunpack.c.h.b16 %v215
  %v240 = vunpack.c.h.b16 %v216
  %v241 = vpack.c.b16 %v226, %v225
  %v242 = vpack.c.b16 %v228, %v227
  %v243 = vpack.c.b16 %v230, %v229
  %v244 = vpack.c.b16 %v232, %v231
  %v245 = vpack.c.b16 %v234, %v233
  %v246 = vpack.c.b16 %v236, %v235
  %v247 = vpack.c.b16 %v238, %v237
  %v248 = vpack.c.b16 %v240, %v239
  %257 = vst [vmem:[%s6] sm:$0xff] %v241
  %258 = vst [vmem:[%s6 + $0x8] sm:$0xff] %v242
  %259 = vst [vmem:[%s6 + $0x10] sm:$0xff] %v243
  %260 = vst [vmem:[%s6 + $0x18] sm:$0xff] %v244
  %261 = vst [vmem:[%s6 + $0x20] sm:$0xff] %v245
  %262 = vst [vmem:[%s6 + $0x28] sm:$0xff] %v246
  %263 = vst [vmem:[%s6 + $0x30] sm:$0xff] %v247
  %264 = vst [vmem:[%s6 + $0x38] sm:$0xff] %v248
  %v265 = vld [vmem:[%s1] sm:$0xf]
  %v266 = vld [vmem:[%s1 + $0x4] sm:$0xf]
  %v267 = vld [vmem:[%s1 + $0x8] sm:$0xf]
  %v268 = vld [vmem:[%s1 + $0xc] sm:$0xf]
  %v269 = vld [vmem:[%s3] sm:$0xff]
  %v270 = vld [vmem:[%s3 + $0x8] sm:$0xff]
  %v271 = vld [vmem:[%s3 + $0x10] sm:$0xff]
  %v272 = vld [vmem:[%s3 + $0x18] sm:$0xff]
  %274 = vset.pattern.permute.xlu0 0
  %275 = vperm.xlu0 %274, %v269
  %v276 = vpop.permute.xlu0 %275
  %279 = vset.pattern.permute.xlu0 0
  %280 = vperm.xlu0 %279, %v270
  %v281 = vpop.permute.xlu0 %280
  %284 = vset.pattern.permute.xlu0 0
  %285 = vperm.xlu0 %284, %v271
  %v286 = vpop.permute.xlu0 %285
  %289 = vset.pattern.permute.xlu0 0
  %290 = vperm.xlu0 %289, %v272
  %v291 = vpop.permute.xlu0 %290
  %v297 = vunpack.c.l.b16 %v265
  %v298 = vunpack.c.l.b16 %v266
  %v299 = vunpack.c.l.b16 %v267
  %v300 = vunpack.c.l.b16 %v268
  %v301 = vpack.c.b16 %v298, %v297
  %v302 = vpack.c.b16 %v300, %v299
  %vm303 = vcmask 523264
  %v305 = vsel %vm303, %v301, 0
  %v308 = vsel %vm303, %v302, 0
  %310 = vmatprep.subr.bf16.mxu0 0
  %311 = vmatpush1.bf16.msra.mxu0 0
  %312 = vmatprep.subr.bf16.mxu0 0
  %313 = vmatpush1.bf16.msra.mxu0 0
  %314 = vmatprep.subr.bf16.mxu0 0
  %315 = vmatpush1.bf16.msra.mxu0 0
  %316 = vmatprep.subr.bf16.mxu0 0
  %317 = vmatpush1.bf16.msra.mxu0 0
  %318 = vmatprep.subr.bf16.mxu0 %v216
  %319 = vmatpush1.bf16.msra.mxu0 %v215
  %320 = vmatprep.subr.bf16.mxu0 %v214
  %321 = vmatpush1.bf16.msra.mxu0 %v213
  %322 = vmatprep.subr.bf16.mxu0 %v212
  %323 = vmatpush1.bf16.msra.mxu0 %v211
  %324 = vmatprep.subr.bf16.mxu0 %v210
  %325 = vmatpush1.bf16.msra.mxu0 %v209
  %326 = vmatprep.subr.bf16.mxu0 0
  %327 = vmatpush2.bf16.msra.mxu0 0
  %328 = vmatprep.subr.bf16.mxu0 0
  %329 = vmatpush2.bf16.msra.mxu0 0
  %330 = vmatprep.subr.bf16.mxu0 0
  %331 = vmatpush2.bf16.msra.mxu0 0
  %332 = vmatprep.subr.bf16.mxu0 0
  %333 = vmatpush2.bf16.msra.mxu0 0
  %334 = vmatprep.subr.bf16.mxu0 0
  %335 = vmatpush2.bf16.msra.mxu0 0
  %336 = vmatprep.subr.bf16.mxu0 0
  %337 = vmatpush2.bf16.msra.mxu0 0
  %338 = vmatprep.subr.bf16.mxu0 0
  %339 = vmatpush2.bf16.msra.mxu0 0
  %340 = vmatprep.subr.bf16.mxu0 0
  %341 = vmatpush2.bf16.msra.mxu0 0
  %342 = vmatprep.mubr.bf16.mxu0 0
  %343 = vmatmul.mubr.bf16.gmra.mxu0 %v305
  %v344 = vpop.f32.mrf.mxu0
  %v345 = vadd.f32 %v276, %v344
  %v346 = vpop.f32.mrf.mxu0
  %v347 = vadd.f32 %v276, %v346
  %v348 = vpop.f32.mrf.mxu0
  %v349 = vadd.f32 %v281, %v348
  %v350 = vpop.f32.mrf.mxu0
  %v351 = vadd.f32 %v281, %v350
  %352 = vmatprep.mubr.bf16.mxu0 0
  %353 = vmatmul.mubr.bf16.gmra.mxu0 %v308
  %v354 = vpop.f32.mrf.mxu0
  %v355 = vadd.f32 %v286, %v354
  %v356 = vpop.f32.mrf.mxu0
  %v357 = vadd.f32 %v286, %v356
  %v358 = vpop.f32.mrf.mxu0
  %v359 = vadd.f32 %v291, %v358
  %v360 = vpop.f32.mrf.mxu0
  %v361 = vadd.f32 %v291, %v360
  %362 = vdwg.mxu0
  %v363 = vunpack.c.l.bf16 %v23
  %v364 = vunpack.c.h.bf16 %v23
  %v365 = vunpack.c.l.bf16 %v24
  %v366 = vunpack.c.h.bf16 %v24
  %v367 = vunpack.c.l.bf16 %v25
  %v368 = vunpack.c.h.bf16 %v25
  %v369 = vunpack.c.l.bf16 %v26
  %v370 = vunpack.c.h.bf16 %v26
  %v371 = vadd.f32 %v363, %v345
  %v372 = vadd.f32 %v364, %v347
  %v373 = vadd.f32 %v365, %v349
  %v374 = vadd.f32 %v366, %v351
  %v375 = vadd.f32 %v367, %v355
  %v376 = vadd.f32 %v368, %v357
  %v377 = vadd.f32 %v369, %v359
  %v378 = vadd.f32 %v370, %v361
  %v379 = vpack.c.bf16 %v373, %v371
  %v380 = vpack.c.bf16 %v374, %v372
  %v381 = vpack.c.bf16 %v377, %v375
  %v382 = vpack.c.bf16 %v378, %v376
  %v387 = vunpack.c.l.b16 %v379
  %v388 = vunpack.c.l.b16 %v380
  %v389 = vunpack.c.h.b16 %v379
  %v390 = vunpack.c.h.b16 %v380
  %v391 = vunpack.c.l.b16 %v381
  %v392 = vunpack.c.l.b16 %v382
  %v393 = vunpack.c.h.b16 %v381
  %v394 = vunpack.c.h.b16 %v382
  %v395 = vpack.c.b16 %v388, %v387
  %v396 = vpack.c.b16 %v390, %v389
  %v397 = vpack.c.b16 %v392, %v391
  %v398 = vpack.c.b16 %v394, %v393
  %403 = vst [vmem:[%s5] sm:$0xff] %v395
  %404 = vst [vmem:[%s5 + $0x8] sm:$0xff] %v396
  %405 = vst [vmem:[%s5 + $0x10] sm:$0xff] %v397
  %406 = vst [vmem:[%s5 + $0x18] sm:$0xff] %v398
  // Predicated region
  $region22: #{t_hamiltonian_layer.1} parent=0 // pred_check
    _
  $region23: #{t_hamiltonian_layer.1} parent=0 // pred_check_branch
    %408 = sbr.rel (0) target = $region25
  $region24: #{t_hamiltonian_layer.1} parent=0 // pred_region
    _
  $region25: #{t_hamiltonian_layer.1} parent=0 // pred_fallthru
    _
  // Predicated region
  $region26: #{t_hamiltonian_layer.1} parent=0 // pred_check
    _
  $region27: #{t_hamiltonian_layer.1} parent=0 // pred_check_branch
    %410 = sbr.rel (0) target = $region29
  $region28: #{t_hamiltonian_layer.1} parent=0 // pred_region
    _
  $region29: #{t_hamiltonian_layer.1} parent=0 // pred_fallthru
    _
  // Predicated region
  $region30: #{t_hamiltonian_layer.1} parent=0 // pred_check
    _
  $region31: #{t_hamiltonian_layer.1} parent=0 // pred_check_branch
    %412 = sbr.rel (0) target = $region33
  $region32: #{t_hamiltonian_layer.1} parent=0 // pred_region
    _
  $region33: #{t_hamiltonian_layer.1} parent=0 // pred_fallthru
    _
  // Predicated region
  $region34: #{t_hamiltonian_layer.1} parent=0 // pred_check
    _
  $region35: #{t_hamiltonian_layer.1} parent=0 // pred_check_branch
    %414 = sbr.rel (0) target = $region37
  $region36: #{t_hamiltonian_layer.1} parent=0 // pred_region
    _
  $region37: #{t_hamiltonian_layer.1} parent=0 // pred_fallthru
    _

</llo_original>
